<compile_context>
chip_gen: v7x
topology: tpu7x:2x2x1
jax: 0.10.0
libtpu: 0.0.40
codegen_flags: <defaults>
</compile_context>

<pallas_src>
import functools

import jax
import jax.numpy as jnp
import numpy as np
from jax.experimental import pallas as pl
from jax.experimental.pallas import tpu as pltpu


# ----------------------------------------------------------------------------
# Kernel: K x K box average (count_include_pad=True) applied R times, fused.
# Operates on one (H, W) image per grid step; halo lives in a VMEM scratch.
# ----------------------------------------------------------------------------
def _box_filter_kernel(x_ref, o_ref, pad_ref, *, ksize, pad, recursions):
    H, W = o_ref.shape
    inv = jnp.float32(1.0 / (ksize * ksize))

    img = x_ref[...].astype(jnp.float32)
    for _ in range(recursions):
        # Zero-padded halo in VMEM (count_include_pad=True: zeros are counted).
        pad_ref[...] = jnp.zeros_like(pad_ref)
        pad_ref[pad:pad + H, pad:pad + W] = img
        padded = pad_ref[...]                       # (H+2p, W+2p)

        # Separable KxK box sum: rows, then columns.
        rowsum = padded[0:H, :]
        for dy in range(1, ksize):
            rowsum = rowsum + padded[dy:dy + H, :]  # (H, W+2p)
        out = rowsum[:, 0:W]
        for dx in range(1, ksize):
            out = out + rowsum[:, dx:dx + W]        # (H, W)

        img = out * inv

    o_ref[...] = img.astype(o_ref.dtype)


# ----------------------------------------------------------------------------
# FilterLow forward (default config), NCHW in / NCHW out.
# ----------------------------------------------------------------------------
def filter_low(x_nchw, *, recursions=1, kernel_size=5):
    # TODO(synk): stride != 1, padding=False, count_include_pad=False and the
    # gaussian=True (GaussianFilter) branch are not implemented — only the
    # module's default configuration is reproduced here.
    assert kernel_size % 2 == 1
    pad = (kernel_size - 1) // 2
    N, C, H, W = x_nchw.shape
    x = x_nchw.reshape(N * C, H, W)          # free reshape, no transpose

    kernel = functools.partial(
        _box_filter_kernel, ksize=kernel_size, pad=pad, recursions=recursions)

    y = pl.pallas_call(
        kernel,
        out_shape=jax.ShapeDtypeStruct((N * C, H, W), x.dtype),
        grid=(N * C,),
        in_specs=[pl.BlockSpec((None, H, W), lambda i: (i, 0, 0))],
        out_specs=pl.BlockSpec((None, H, W), lambda i: (i, 0, 0)),
        scratch_shapes=[pltpu.VMEM((H + 2 * pad, W + 2 * pad), jnp.float32)],
        compiler_params=pltpu.CompilerParams(
            dimension_semantics=("parallel",)),
    )(x)
    # TODO(synk): for production-size images (H, W >~ 1k) add row tiling with a
    # 2-row halo (grid (N*C, H/TH)) so blocks fit v7x's 64 MiB VMEM budget.
    return y.reshape(N, C, H, W)


# ----------------------------------------------------------------------------
# Plain-JAX reference (reduce_window) for a numerical sanity check.
# ----------------------------------------------------------------------------
def _ref_filter_low(x_nchw, *, recursions=1, kernel_size=5):
    pad = (kernel_size - 1) // 2
    y = x_nchw
    for _ in range(recursions):
        s = jax.lax.reduce_window(
            y, jnp.float32(0.0), jax.lax.add,
            window_dimensions=(1, 1, kernel_size, kernel_size),
            window_strides=(1, 1, 1, 1),
            padding=((0, 0), (0, 0), (pad, pad), (pad, pad)))
        y = s / (kernel_size * kernel_size)
    return y


if __name__ == "__main__":
    key = jax.random.PRNGKey(0)
    x = jax.random.normal(key, (2, 3, 16, 16), jnp.float32)   # NCHW, like PyTorch

    # Module defaults: recursions=1, AvgPool2d(k=5, s=1, p=2, include_pad=True).
    out = jax.block_until_ready(filter_low(x))
    assert out.shape == x.shape, out.shape
    ref = jax.block_until_ready(_ref_filter_low(x))
    np.testing.assert_allclose(np.asarray(out), np.asarray(ref),
                               rtol=1e-5, atol=1e-5)

    # Fused multi-recursion path (intermediate stays in VMEM, single kernel).
    out2 = jax.block_until_ready(filter_low(x, recursions=2))
    ref2 = jax.block_until_ready(_ref_filter_low(x, recursions=2))
    np.testing.assert_allclose(np.asarray(out2), np.asarray(ref2),
                               rtol=1e-5, atol=1e-5)

    print("KERNEL_OK")
</pallas_src>

<mosaic_0001>
module attributes {stable_mosaic.version = 11 : i64} {
  func.func @_box_filter_kernel(%arg0: i32, %arg1: memref<1x16x16xf32, #tpu.memory_space<vmem>>, %arg2: memref<1x16x16xf32, #tpu.memory_space<vmem>>, %arg3: memref<20x20xf32, #tpu.memory_space<vmem>>) attributes {dimension_semantics = [#tpu.dimension_semantics<parallel>], iteration_bounds = array<i64: 6>, scalar_prefetch = 0 : i64, scratch_operands = 1 : i64, tpu.core_type = #tpu.core_type<tc>, window_params = [{transform_indices = @transform_0, window_bounds = array<i64: 1, 16, 16>}, {transform_indices = @transform_1, window_bounds = array<i64: 1, 16, 16>}]} {
    %c0 = arith.constant 0 : index
    %c0_0 = arith.constant 0 : index
    %c0_1 = arith.constant 0 : index
    %0 = vector.load %arg1[%c0, %c0_0, %c0_1] : memref<1x16x16xf32, #tpu.memory_space<vmem>>, vector<1x16x16xf32>
    %1 = vector.shape_cast %0 : vector<1x16x16xf32> to vector<16x16xf32>
    %cst = arith.constant 0.000000e+00 : f32
    %2 = vector.broadcast %cst : f32 to vector<20x20xf32>
    %c0_2 = arith.constant 0 : index
    %c0_3 = arith.constant 0 : index
    %3 = vector.load %arg3[%c0_2, %c0_3] : memref<20x20xf32, #tpu.memory_space<vmem>>, vector<20x20xf32>
    tpu.vector_store %arg3[%c0_2, %c0_3], %2 {strides = array<i32>} : memref<20x20xf32, #tpu.memory_space<vmem>>, vector<20x20xf32>,
    %c2 = arith.constant 2 : index
    %c2_4 = arith.constant 2 : index
    %4 = vector.load %arg3[%c2, %c2_4] : memref<20x20xf32, #tpu.memory_space<vmem>>, vector<16x16xf32>
    tpu.vector_store %arg3[%c2, %c2_4], %1 {strides = array<i32>} : memref<20x20xf32, #tpu.memory_space<vmem>>, vector<16x16xf32>,
    %c0_5 = arith.constant 0 : index
    %c0_6 = arith.constant 0 : index
    %5 = vector.load %arg3[%c0_5, %c0_6] : memref<20x20xf32, #tpu.memory_space<vmem>>, vector<20x20xf32>
    %6 = vector.extract_strided_slice %5 {offsets = [0, 0], sizes = [16, 20], strides = [1, 1]} : vector<20x20xf32> to vector<16x20xf32>
    %7 = vector.extract_strided_slice %5 {offsets = [1, 0], sizes = [16, 20], strides = [1, 1]} : vector<20x20xf32> to vector<16x20xf32>
    %8 = arith.addf %6, %7 : vector<16x20xf32>
    %9 = vector.extract_strided_slice %5 {offsets = [2, 0], sizes = [16, 20], strides = [1, 1]} : vector<20x20xf32> to vector<16x20xf32>
    %10 = arith.addf %8, %9 : vector<16x20xf32>
    %11 = vector.extract_strided_slice %5 {offsets = [3, 0], sizes = [16, 20], strides = [1, 1]} : vector<20x20xf32> to vector<16x20xf32>
    %12 = arith.addf %10, %11 : vector<16x20xf32>
    %13 = vector.extract_strided_slice %5 {offsets = [4, 0], sizes = [16, 20], strides = [1, 1]} : vector<20x20xf32> to vector<16x20xf32>
    %14 = arith.addf %12, %13 : vector<16x20xf32>
    %15 = vector.extract_strided_slice %14 {offsets = [0, 0], sizes = [16, 16], strides = [1, 1]} : vector<16x20xf32> to vector<16x16xf32>
    %16 = vector.extract_strided_slice %14 {offsets = [0, 1], sizes = [16, 16], strides = [1, 1]} : vector<16x20xf32> to vector<16x16xf32>
    %17 = arith.addf %15, %16 : vector<16x16xf32>
    %18 = vector.extract_strided_slice %14 {offsets = [0, 2], sizes = [16, 16], strides = [1, 1]} : vector<16x20xf32> to vector<16x16xf32>
    %19 = arith.addf %17, %18 : vector<16x16xf32>
    %20 = vector.extract_strided_slice %14 {offsets = [0, 3], sizes = [16, 16], strides = [1, 1]} : vector<16x20xf32> to vector<16x16xf32>
    %21 = arith.addf %19, %20 : vector<16x16xf32>
    %22 = vector.extract_strided_slice %14 {offsets = [0, 4], sizes = [16, 16], strides = [1, 1]} : vector<16x20xf32> to vector<16x16xf32>
    %23 = arith.addf %21, %22 : vector<16x16xf32>
    %cst_7 = arith.constant 4.000000e-02 : f32
    %24 = vector.broadcast %cst_7 : f32 to vector<16x16xf32>
    %25 = arith.mulf %23, %24 : vector<16x16xf32>
    %c0_8 = arith.constant 0 : index
    %c0_9 = arith.constant 0 : index
    %c0_10 = arith.constant 0 : index
    %26 = vector.load %arg2[%c0_8, %c0_9, %c0_10] : memref<1x16x16xf32, #tpu.memory_space<vmem>>, vector<1x16x16xf32>
    %27 = vector.shape_cast %26 : vector<1x16x16xf32> to vector<16x16xf32>
    %28 = vector.shape_cast %25 : vector<16x16xf32> to vector<1x16x16xf32>
    tpu.vector_store %arg2[%c0_8, %c0_9, %c0_10], %28 {strides = array<i32>} : memref<1x16x16xf32, #tpu.memory_space<vmem>>, vector<1x16x16xf32>,
    return
  }
  func.func @transform_0(%arg0: i32) -> (i32, i32, i32) {
    %c0_i32 = arith.constant 0 : i32
    %c0_i32_0 = arith.constant 0 : i32
    %c0_i32_1 = arith.constant 0 : i32
    return %arg0, %c0_i32, %c0_i32_0 : i32, i32, i32
  }
  func.func @transform_1(%arg0: i32) -> (i32, i32, i32) {
    %c0_i32 = arith.constant 0 : i32
    %c0_i32_0 = arith.constant 0 : i32
    %c0_i32_1 = arith.constant 0 : i32
    return %arg0, %c0_i32, %c0_i32_0 : i32, i32, i32
  }
}

</mosaic_0001>

<llo_original>
// kernel: tpu_custom_call.1
$region0: #{tpu_custom_call.1}
  #allocation0 [shape = 'u32[]', space=smem, size = 0x4, offset = 0x4, fixed_abs, tag = 'smem constant byte address 0x4 - core index']
  #allocation1 [shape = 'u32[144,128]{1,0:T(1,128)}', space=vmem, size = 0x12000, scoped, tag = 'internal scratch']
  #allocation2 [shape = 'f32[20,20]{1,0:T(8,128)}', space=vmem, size = 0x3000, scoped, tag = 'scratch operand']
  %s0 = inlined_call_operand.hbm [shape: f32[6,16,16], index: 0, kind: input, shape index: {}]
  %s1 = inlined_call_operand.hbm [shape: f32[6,16,16], index: 1, kind: output, shape index: {}]
  %s2 = sld [smem:[#allocation0]]
  $region41: #{tpu_custom_call.1} parent=0
    _
  %s4 = ssub.s32 1, %s2
  %s5 = scalar_select 0, %s4, %s2
  $region1: #{tpu_custom_call.1} parent=0
    #allocation3 [shape = 'u8[16384]{0}', space=vmem, size = 0x4000, scoped, tag = 'input window, operand 0']
    #allocation4 [shape = 's32[2]{0}', space=sflag, size = 0x8, scoped, tag = 'scoped memory for tpu_custom_call.1']
    #allocation5 [shape = 's32[2]{0}', space=sflag, size = 0x8, scoped, tag = 'scoped memory for tpu_custom_call.1']
    #allocation6 [shape = 'u8[16384]{0}', space=vmem, size = 0x4000, scoped, tag = 'output window, operand 0']
    %6 = vsyncpa [#allocation4], 0
    %s7 = scalar_lea.sflag [#allocation4], 1
    %8 = vsyncpa %s7, 0
    %9 = vsyncpa [#allocation5], 0
    %s10 = scalar_lea.sflag [#allocation5], 1
    %11 = vsyncpa %s10, 0
    loop: start=0, step=1, limit=8
    $region2: #{tpu_custom_call.1} parent=1 // loop_pre_header
      _
    $region3: #{tpu_custom_call.1} parent=1 // loop_header
      %s13 = sphi 0, %s17
      %p14 = scmp.ge.s32.totalorder %s13, 8
      %s23 = sphi 0, %s25
      %s26 = sphi 0, %s23
      %s27 = sphi 0, %s26
      %s43 = sphi 0, %s27
      %s49 = sphi 0, %s51
      %s52 = sphi 0, %s49
      %s53 = sphi 0, %s52
      %s69 = sphi 0, %s53
    $region4: #{tpu_custom_call.1} parent=1 // loop_header_branch
      %16 = sbr.rel (%p14) target = $region8
    $region5: #{tpu_custom_call.1} parent=1 // loop_body
      %s18 = ssub.s32 %s13, 1
      %s19 = ssub.s32 %s13, 2
      %s20 = sadd.s32 %s13, 1
      %s21 = ssub.s32 %s13, %s20
      %p22 = scmp.eq.s32.totalorder %s21, 0
      %s24 = sadd.s32 %s23, 1
      %s25 = scalar_select %p22, %s23, %s24
      %p28 = pneg %p22
      %p29 = scmp.eq.s32.totalorder %s13, 5
      %p30 = por %p28, %p29
      %p31 = scmp.ne.s32.totalorder %s23, %s26
      %p32 = scmp.eq.s32.totalorder %s13, 0
      %p33 = por %p31, %p32
      %p34 = scmp.ne.s32.totalorder %s23, %s26
      %p35 = scmp.eq.s32.totalorder %s18, 5
      %p36 = por %p34, %p35
      %p37 = scmp.ne.s32.totalorder %s26, %s27
      %p38 = scmp.eq.s32.totalorder %s18, 0
      %p39 = por %p37, %p38
      %p40 = scmp.ne.s32.totalorder %s26, %s27
      %p41 = scmp.eq.s32.totalorder %s19, 5
      %p42 = por %p40, %p41
      %p44 = scmp.ne.s32.totalorder %s27, %s43
      %p45 = scmp.eq.s32.totalorder %s19, 0
      %p46 = por %p44, %p45
      %s47 = ssub.s32 %s13, %s20
      %p48 = scmp.eq.s32.totalorder %s47, 0
      %s50 = sadd.s32 %s49, 1
      %s51 = scalar_select %p48, %s49, %s50
      %p54 = pneg %p48
      %p55 = scmp.eq.s32.totalorder %s13, 5
      %p56 = por %p54, %p55
      %p57 = scmp.ne.s32.totalorder %s49, %s52
      %p58 = scmp.eq.s32.totalorder %s13, 0
      %p59 = por %p57, %p58
      %p60 = scmp.ne.s32.totalorder %s49, %s52
      %p61 = scmp.eq.s32.totalorder %s18, 5
      %p62 = por %p60, %p61
      %p63 = scmp.ne.s32.totalorder %s52, %s53
      %p64 = scmp.eq.s32.totalorder %s18, 0
      %p65 = por %p63, %p64
      %p66 = scmp.ne.s32.totalorder %s52, %s53
      %p67 = scmp.eq.s32.totalorder %s19, 5
      %p68 = por %p66, %p67
      %p70 = scmp.ne.s32.totalorder %s53, %s69
      %p71 = scmp.eq.s32.totalorder %s19, 0
      %p72 = por %p70, %p71
      %p73 = scmp.le.s32.totalorder 1, %s13
      %p74 = scmp.lt.s32.totalorder %s13, 7
      %p75 = pnand %p73, %p74
      %p76 = pneg %p75
      // Predicated region
      $region9: #{tpu_custom_call.1} parent=5 // pred_check
        _
      $region10: #{tpu_custom_call.1} parent=5 // pred_check_branch
        %78 = sbr.rel (%p75) target = $region12
      $region11: #{tpu_custom_call.1} parent=5 // pred_region
        %s79 = ssub.s32 %s13, 1
      $region12: #{tpu_custom_call.1} parent=5 // pred_fallthru
        _
      %p80 = scmp.lt.s32.totalorder %s13, 6
      // Predicated region
      $region13: #{tpu_custom_call.1} parent=5 // pred_check
        %p81 = pneg %p80
      $region14: #{tpu_custom_call.1} parent=5 // pred_check_branch
        %83 = sbr.rel (%p81) target = $region16
      $region15: #{tpu_custom_call.1} parent=5 // pred_region
        // Predicated region
        $region17: #{tpu_custom_call.1} parent=15 // pred_check
          %p84 = pneg %p33
        $region18: #{tpu_custom_call.1} parent=15 // pred_check_branch
          %86 = sbr.rel (%p84) target = $region20
        $region19: #{tpu_custom_call.1} parent=15 // pred_region
          %s87 = sand.u32 %s23, 1
          %s88 = scalar_lea.sflag [#allocation4], %s87
          %s89 = sand.u32 %s23, 1
          %s90 = smul.addr %s89, 16
          %s91 = scalar_lea.vmem [#allocation3], %s90
          %s93 = ssub.s32 256, 256
          %94 = vsyncadd %s88, %s93
          %s95 = smul.addr %s13, 2
          %s96 = smul.addr %s95, 128
          %s97 = scalar_lea.hbm %s0, %s96
          %s98 = sshll.u32 %s91, 4
          %s99 = int_to_ptr.vmem [resolvable:$true] %s98
          %104 = dma.hbm_to_vmem [thread:$0]  %s97, 256, %s99, %s88, 128, 128, 8
        $region20: #{tpu_custom_call.1} parent=15 // pred_fallthru
          _
      $region16: #{tpu_custom_call.1} parent=5 // pred_fallthru
        _
      %p105 = scmp.le.s32.totalorder 1, %s13
      %p106 = scmp.lt.s32.totalorder %s13, 7
      %p107 = pnand %p105, %p106
      %p108 = pneg %p107
      // Predicated region
      $region21: #{tpu_custom_call.1} parent=5 // pred_check
        _
      $region22: #{tpu_custom_call.1} parent=5 // pred_check_branch
        %110 = sbr.rel (%p107) target = $region24
      $region23: #{tpu_custom_call.1} parent=5 // pred_region
        %s111 = ssub.s32 %s13, 1
        %s112 = sand.u32 %s26, 1
        %s113 = scalar_lea.sflag [#allocation4], %s112
        %s114 = sand.u32 %s26, 1
        %s115 = smul.addr %s114, 16
        %s116 = scalar_lea.vmem [#allocation3], %s115
        // Predicated region
        $region25: #{tpu_custom_call.1} parent=23 // pred_check
          %p117 = pneg %p39
        $region26: #{tpu_custom_call.1} parent=23 // pred_check_branch
          %119 = sbr.rel (%p117) target = $region28
        $region27: #{tpu_custom_call.1} parent=23 // pred_region
          %120 = dma.done %s113, 256
        $region28: #{tpu_custom_call.1} parent=23 // pred_fallthru
          _
        %s121 = sand.u32 %s26, 1
        %s122 = scalar_lea.sflag [#allocation4], %s121
        %s123 = sand.u32 %s26, 1
        %s124 = smul.addr %s123, 16
        %s125 = scalar_lea.vmem [#allocation3], %s124
        %p126 = pneg %p39
        %p127 = pneg %p36
        %p128 = pneg %p65
        %p129 = pneg %p62
        %s130 = sand.u32 %s52, 1
        %s131 = scalar_lea.sflag [#allocation5], %s130
        %s132 = sand.u32 %s52, 1
        %s133 = smul.addr %s132, 16
        %s134 = scalar_lea.vmem [#allocation6], %s133
        %v135 = vld [vmem:[%s116] sm:$0xff]
        %v136 = vld [vmem:[%s116 + $0x8] sm:$0xff]
        %vm137 = vcmask 162816
        %138 = vst.msk [vmem:[#allocation2] sm:$0xff] %vm137, 0.0
        %139 = vst.msk [vmem:[#allocation2 + $0x8] sm:$0xff] %vm137, 0.0
        %vm140 = vcmask 158720
        %141 = vst.msk [vmem:[#allocation2 + $0x10] sm:$0xf] %vm140, 0.0
        %144 = vrot.lane.b32.xlu0 %v135, 2
        %v145 = vpop.permute.xlu0 %144
        %146 = vrot.lane.b32.xlu0 %v136, 2
        %v147 = vpop.permute.xlu0 %146
        %vm150 = vcmask 146448
        %151 = vst.msk [vmem:[#allocation2 + $0x2] sm:$0xff] %vm150, %v145
        %152 = vst.msk [vmem:[#allocation2 + $0xa] sm:$0xff] %vm150, %v147
        %v153 = vld [vmem:[#allocation2] sm:$0xff]
        %v154 = vld [vmem:[#allocation2 + $0x8] sm:$0xff]
        %v155 = vld [vmem:[#allocation2 + $0x10] sm:$0xf]
        %vm159 = vcmask 1046528
        %v160 = vrot.slane %v153, 1
        %v161 = vrot.slane %v154, 1
        %v162 = vsel %vm159, %v160, %v161
        %v163 = vrot.slane %v155, 1
        %v164 = vsel %vm159, %v161, %v163
        %v167 = vadd.f32 %v153, %v162
        %v168 = vadd.f32 %v154, %v164
        %vm169 = vcmask 1045504
        %v170 = vrot.slane %v153, 2
        %v171 = vrot.slane %v154, 2
        %v172 = vsel %vm169, %v170, %v171
        %v173 = vrot.slane %v155, 2
        %v174 = vsel %vm169, %v171, %v173
        %v177 = vadd.f32 %v167, %v172
        %v178 = vadd.f32 %v168, %v174
        %vm179 = vcmask 1044480
        %v180 = vrot.slane %v153, 3
        %v181 = vrot.slane %v154, 3
        %v182 = vsel %vm179, %v180, %v181
        %v183 = vrot.slane %v155, 3
        %v184 = vsel %vm179, %v181, %v183
        %v187 = vadd.f32 %v177, %v182
        %v188 = vadd.f32 %v178, %v184
        %vm189 = vcmask 1043456
        %v190 = vrot.slane %v153, 4
        %v191 = vrot.slane %v154, 4
        %v192 = vsel %vm189, %v190, %v191
        %v193 = vrot.slane %v155, 4
        %v194 = vsel %vm189, %v191, %v193
        %v197 = vadd.f32 %v187, %v192
        %v198 = vadd.f32 %v188, %v194
        %201 = vrot.lane.b32.xlu0 %v197, 127
        %v202 = vpop.permute.xlu0 %201
        %203 = vrot.lane.b32.xlu0 %v198, 127
        %v204 = vpop.permute.xlu0 %203
        %v207 = vadd.f32 %v197, %v202
        %v208 = vadd.f32 %v198, %v204
        %209 = vrot.lane.b32.xlu0 %v197, 126
        %v210 = vpop.permute.xlu0 %209
        %211 = vrot.lane.b32.xlu0 %v198, 126
        %v212 = vpop.permute.xlu0 %211
        %v215 = vadd.f32 %v207, %v210
        %v216 = vadd.f32 %v208, %v212
        %217 = vrot.lane.b32.xlu0 %v197, 125
        %v218 = vpop.permute.xlu0 %217
        %219 = vrot.lane.b32.xlu0 %v198, 125
        %v220 = vpop.permute.xlu0 %219
        %v223 = vadd.f32 %v215, %v218
        %v224 = vadd.f32 %v216, %v220
        %225 = vrot.lane.b32.xlu0 %v197, 124
        %v226 = vpop.permute.xlu0 %225
        %227 = vrot.lane.b32.xlu0 %v198, 124
        %v228 = vpop.permute.xlu0 %227
        %v231 = vadd.f32 %v223, %v226
        %v232 = vadd.f32 %v224, %v228
        %v233 = vmul.f32 %v231, 0.04
        %v234 = vmul.f32 %v232, 0.04
        %vm235 = vcmask 130048
        %236 = vst.msk [vmem:[%s134] sm:$0xff] %vm235, %v233
        %237 = vst.msk [vmem:[%s134 + $0x8] sm:$0xff] %vm235, %v234
        %s238 = sand.u32 %s52, 1
        %s239 = scalar_lea.sflag [#allocation5], %s238
        %s240 = sand.u32 %s52, 1
        %s241 = smul.addr %s240, 16
        %s242 = scalar_lea.vmem [#allocation6], %s241
        // Predicated region
        $region29: #{tpu_custom_call.1} parent=23 // pred_check
          %p243 = pneg %p62
        $region30: #{tpu_custom_call.1} parent=23 // pred_check_branch
          %245 = sbr.rel (%p243) target = $region32
        $region31: #{tpu_custom_call.1} parent=23 // pred_region
          %s247 = ssub.s32 256, 256
          %248 = vsyncadd %s239, %s247
          %s249 = smul.addr %s18, 2
          %s250 = smul.addr %s249, 128
          %s251 = scalar_lea.hbm %s1, %s250
          %s252 = sshll.u32 %s242, 4
          %s253 = int_to_ptr.vmem [resolvable:$true] %s252
          %258 = dma.vmem_to_hbm [thread:$0]  %s253, 256, %s251, %s239, 128, 128, 8
        $region32: #{tpu_custom_call.1} parent=23 // pred_fallthru
          _
      $region24: #{tpu_custom_call.1} parent=5 // pred_fallthru
        _
      %p259 = scmp.le.s32.totalorder 2, %s13
      // Predicated region
      $region33: #{tpu_custom_call.1} parent=5 // pred_check
        %p260 = pneg %p259
      $region34: #{tpu_custom_call.1} parent=5 // pred_check_branch
        %262 = sbr.rel (%p260) target = $region36
      $region35: #{tpu_custom_call.1} parent=5 // pred_region
        %s263 = ssub.s32 %s13, 2
        // Predicated region
        $region37: #{tpu_custom_call.1} parent=35 // pred_check
          %p264 = pneg %p68
        $region38: #{tpu_custom_call.1} parent=35 // pred_check_branch
          %266 = sbr.rel (%p264) target = $region40
        $region39: #{tpu_custom_call.1} parent=35 // pred_region
          %s267 = sand.u32 %s53, 1
          %s268 = scalar_lea.sflag [#allocation5], %s267
          %s269 = sand.u32 %s53, 1
          %s270 = smul.addr %s269, 16
          %s271 = scalar_lea.vmem [#allocation6], %s270
          %272 = dma.done %s268, 256
        $region40: #{tpu_custom_call.1} parent=35 // pred_fallthru
          _
      $region36: #{tpu_custom_call.1} parent=5 // pred_fallthru
        _
    $region6: #{tpu_custom_call.1} parent=1 // loop_footer
      %s17 = sadd.s32 1, %s13
    $region7: #{tpu_custom_call.1} parent=1 // loop_footer_branch
      %12 = sbr.rel target = $region3
    $region8: #{tpu_custom_call.1} parent=1 // loop_exit
      _
    %273 = vsyncpa [#allocation4], 1
    %s274 = scalar_lea.sflag [#allocation4], 1
    %275 = vsyncpa %s274, 1
    %276 = vsyncpa [#allocation5], 1
    %s277 = scalar_lea.sflag [#allocation5], 1
    %278 = vsyncpa %s277, 1

</llo_original>
